<compile_context>
chip_gen: v7x
topology: tpu7x:2x2x1
jax: 0.10.0
libtpu: 0.0.40
codegen_flags: <defaults>
</compile_context>

<pallas_src>
import jax
import jax.numpy as jnp
from jax.experimental import pallas as pl
from jax.experimental.pallas import tpu as pltpu


def _round_up(x, m):
    return ((x + m - 1) // m) * m


def _gaussian_upsample_kernel(params_ref, enc_ref, out_ref):
    """One (batch, T-tile) grid step.

    params_ref : (1, 2, L) f32   row 0 = token centers c, row 1 = -(range_outputs ** -2)
    enc_ref    : (1, L, D) f32   encoder features (resident across the T axis)
    out_ref    : (1, TILE_T, D)  upsampled features for this frame tile (bf16)
    """
    params = params_ref[0]                        # (2, L)
    c = params[0:1, :]                            # (1, L) token centers
    neg_inv_r2 = params[1:2, :]                   # (1, L) -(range ** -2)
    enc = enc_ref[0]                              # (L, D) f32

    tile_t = out_ref.shape[1]
    L = c.shape[1]

    # absolute frame index along rows, token index along lanes -> (TILE_T, L)
    t0 = (pl.program_id(1) * tile_t).astype(jnp.float32)
    t = jax.lax.broadcasted_iota(jnp.int32, (tile_t, L), 0).astype(jnp.float32) + t0

    diff = t - c
    w = jnp.exp(neg_inv_r2 * diff * diff)         # (TILE_T, L)

    denom = jnp.sum(w, axis=1, keepdims=True)     # (TILE_T, 1)
    # guard 0/0 for frames past a batch element's total duration; exact reciprocal is
    # negligible on a (TILE_T, 1) vector and tightens accuracy a bit.
    inv_denom = pl.reciprocal(jnp.maximum(denom, 1e-12), approx=False)

    # w = w1 / w2 then w^T @ enc  ==  (w @ enc) * (1 / sum_l w);  bf16 MXU, f32 accumulate
    unnorm = jnp.dot(w.astype(jnp.bfloat16), enc.astype(jnp.bfloat16),
                     preferred_element_type=jnp.float32)         # (TILE_T, D)
    out_ref[0] = (unnorm * inv_denom).astype(out_ref.dtype)


def gaussian_upsample(encoder_outputs, durations, range_outputs, *,
                      tile_t=512, out_dtype=jnp.bfloat16):
    """encoder_outputs (B,L,D) f32, durations (B,L) i32, range_outputs (B,L,1) f32."""
    B, L, D = encoder_outputs.shape

    dur_f = durations.astype(jnp.float32)
    totals = jnp.sum(durations, axis=-1)             # (B,)
    T = int(jnp.max(totals))                         # mirrors torch.max(x).item()

    e = jnp.cumsum(dur_f, axis=-1)                   # (B, L) token ends
    start = e - dur_f                                # (B, L) token starts
    c = e - 0.5 * dur_f                              # (B, L) token centers
    neg_inv_r2 = -(range_outputs[..., 0] ** (-2.0))  # (B, L)

    # ---- alignment depends only on durations: O(B*T*log L) searchsorted formulation ----
    t_idx = jnp.arange(T, dtype=jnp.float32)                      # (T,)
    tok = jax.vmap(lambda eb: jnp.searchsorted(eb, t_idx, side='right'))(e)   # (B, T)
    tok = jnp.minimum(tok, L - 1)
    start_t = jnp.take_along_axis(start, tok, axis=-1)            # (B, T)
    alignment = t_idx[None, :] - start_t + 1.0
    alignment = jnp.where(t_idx[None, :] < e[:, -1:],             # zero past total duration
                          alignment, 0.0)[..., None]              # (B, T, 1)

    # ---- per-token params: one tiny (B, 2, L) DMA per batch element ----
    params = jnp.stack([c, neg_inv_r2], axis=1)                   # (B, 2, L)

    # ---- tile the frame axis; Pallas masks the partial last block (no padding, no slice) ----
    tile_t = min(tile_t, _round_up(T, 8))
    n_t = pl.cdiv(T, tile_t)
    if B * n_t < 2 and T > 8:
        # guarantee >=2 grid programs so both v7x TensorCores get work
        tile_t = max(8, _round_up(pl.cdiv(T, 2), 8))
        n_t = pl.cdiv(T, tile_t)

    out = pl.pallas_call(
        _gaussian_upsample_kernel,
        out_shape=jax.ShapeDtypeStruct((B, T, D), out_dtype),
        grid_spec=pltpu.PrefetchScalarGridSpec(
            num_scalar_prefetch=0,
            grid=(B, n_t),
            in_specs=[
                # per-token params + encoder block stay resident across the T axis
                pl.BlockSpec((1, 2, L), lambda b, t: (b, 0, 0)),
                pl.BlockSpec((1, L, D), lambda b, t: (b, 0, 0)),
            ],
            out_specs=pl.BlockSpec((1, tile_t, D), lambda b, t: (b, t, 0)),
        ),
        compiler_params=pltpu.CompilerParams(
            dimension_semantics=("parallel", "parallel"),
            vmem_limit_bytes=32 * 1024 * 1024),
    )(params, encoder_outputs)

    return alignment, out   # matches (alignment.unsqueeze(-1), out)


def _reference(encoder_outputs, durations, range_outputs):
    """Pure-JAX port of the PyTorch GaussianUpsample.forward for verification."""
    dur_f = durations.astype(jnp.float32)
    totals = jnp.sum(durations, axis=-1)
    T = int(jnp.max(totals))
    e = jnp.cumsum(dur_f, axis=-1)
    c = (e - 0.5 * dur_f)[..., None]                     # (B, L, 1)
    t = jnp.arange(T, dtype=jnp.float32)[None, None, :]  # (1, 1, T)
    w1 = jnp.exp(-(range_outputs ** -2.0) * (t - c) ** 2)
    w2 = jnp.sum(w1, axis=1, keepdims=True)
    w = w1 / w2
    out = jnp.einsum('blt,bld->btd', w, encoder_outputs)
    start = (e - dur_f)[..., None]
    end = e[..., None]
    mask = (t >= start) & (t < end)
    align = jnp.sum(jnp.where(mask, t - start + 1.0, 0.0), axis=1)[..., None]
    return align, out


if __name__ == "__main__":
    key = jax.random.PRNGKey(0)
    k1, k2, k3 = jax.random.split(key, 3)

    B, L, D = 2, 8, 32
    encoder_outputs = jax.random.normal(k1, (B, L, D), dtype=jnp.float32)
    durations = jax.random.randint(k2, (B, L), 1, 5, dtype=jnp.int32)      # 1..4 frames/token
    range_outputs = jax.random.uniform(k3, (B, L, 1), dtype=jnp.float32,
                                       minval=0.5, maxval=2.0)

    align, out = gaussian_upsample(encoder_outputs, durations, range_outputs)
    jax.block_until_ready((align, out))

    align_ref, out_ref = _reference(encoder_outputs, durations, range_outputs)
    assert align.shape == align_ref.shape and out.shape == out_ref.shape

    # Compare only frames within each batch element's total duration: past that both the
    # PyTorch module and the reference hit 0/0 (NaN) while the kernel clamps the denominator.
    totals = jnp.sum(durations, axis=-1)
    T = out.shape[1]
    valid = (jnp.arange(T)[None, :] < totals[:, None])[..., None]          # (B, T, 1)
    out_k = jnp.where(valid, out.astype(jnp.float32), 0.0)
    out_r = jnp.where(valid, out_ref, 0.0)

    assert jnp.allclose(align, align_ref, atol=1e-5, rtol=1e-5)
    # bf16 MXU matmul + bf16 output -> looser tolerance than the f32 original
    assert jnp.allclose(out_k, out_r, atol=2e-2, rtol=2e-2)

    print("KERNEL_OK")
</pallas_src>

<mosaic_0001>
module attributes {stable_mosaic.version = 11 : i64} {
  func.func @_gaussian_upsample_kernel(%arg0: i32, %arg1: i32, %arg2: memref<1x2x8xf32, #tpu.memory_space<vmem>>, %arg3: memref<1x8x32xf32, #tpu.memory_space<vmem>>, %arg4: memref<1x24x32xbf16, #tpu.memory_space<vmem>>) attributes {dimension_semantics = [#tpu.dimension_semantics<parallel>, #tpu.dimension_semantics<parallel>], iteration_bounds = array<i64: 2, 1>, scalar_prefetch = 0 : i64, scratch_operands = 0 : i64, tpu.core_type = #tpu.core_type<tc>, window_params = [{transform_indices = @transform_0, window_bounds = array<i64: 1, 2, 8>}, {transform_indices = @transform_1, window_bounds = array<i64: 1, 8, 32>}, {transform_indices = @transform_2, window_bounds = array<i64: 1, 24, 32>}]} {
    %c0 = arith.constant 0 : index
    %c0_0 = arith.constant 0 : index
    %c0_1 = arith.constant 0 : index
    %0 = vector.load %arg2[%c0, %c0_0, %c0_1] : memref<1x2x8xf32, #tpu.memory_space<vmem>>, vector<1x2x8xf32>
    %1 = vector.shape_cast %0 : vector<1x2x8xf32> to vector<2x8xf32>
    %2 = vector.extract_strided_slice %1 {offsets = [0, 0], sizes = [1, 8], strides = [1, 1]} : vector<2x8xf32> to vector<1x8xf32>
    %3 = vector.extract_strided_slice %1 {offsets = [1, 0], sizes = [1, 8], strides = [1, 1]} : vector<2x8xf32> to vector<1x8xf32>
    %c0_2 = arith.constant 0 : index
    %c0_3 = arith.constant 0 : index
    %c0_4 = arith.constant 0 : index
    %4 = vector.load %arg3[%c0_2, %c0_3, %c0_4] : memref<1x8x32xf32, #tpu.memory_space<vmem>>, vector<1x8x32xf32>
    %5 = vector.shape_cast %4 : vector<1x8x32xf32> to vector<8x32xf32>
    %c24_i32 = arith.constant 24 : i32
    %6 = arith.muli %arg1, %c24_i32 : i32
    %7 = arith.sitofp %6 : i32 to f32
    %8 = tpu.iota {dimensions = array<i32: 0>} : vector<24x8xi32>
    %9 = arith.sitofp %8 : vector<24x8xi32> to vector<24x8xf32>
    %10 = vector.broadcast %7 : f32 to vector<24x8xf32>
    %11 = arith.addf %9, %10 : vector<24x8xf32>
    %12 = vector.broadcast %2 : vector<1x8xf32> to vector<24x8xf32>
    %13 = arith.subf %11, %12 : vector<24x8xf32>
    %14 = vector.broadcast %3 : vector<1x8xf32> to vector<24x8xf32>
    %15 = arith.mulf %14, %13 : vector<24x8xf32>
    %16 = arith.mulf %15, %13 : vector<24x8xf32>
    %17 = math.exp %16 : vector<24x8xf32>
    %cst = arith.constant dense<0.000000e+00> : vector<24xf32>
    %18 = vector.multi_reduction <add>, %17, %cst [1] : vector<24x8xf32> to vector<24xf32>
    %19 = vector.shape_cast %18 : vector<24xf32> to vector<24x1xf32>
    %cst_5 = arith.constant 9.99999996E-13 : f32
    %20 = vector.broadcast %cst_5 : f32 to vector<24x1xf32>
    %21 = arith.maximumf %19, %20 : vector<24x1xf32>
    %22 = tpu.reciprocal %21 : vector<24x1xf32> -> vector<24x1xf32>
    %23 = arith.truncf %17 : vector<24x8xf32> to vector<24x8xbf16>
    %24 = arith.truncf %5 : vector<8x32xf32> to vector<8x32xbf16>
    %cst_6 = arith.constant dense<0.000000e+00> : vector<24x32xf32>
    %25 = tpu.matmul %23, %24, %cst_6 {dimension_numbers = #tpu.dot_dimension_numbers<[1], [0], [0], [1], [0, 0, 1, 1], [], []>} : vector<24x8xbf16>, vector<8x32xbf16>, vector<24x32xf32> -> vector<24x32xf32>
    %26 = vector.broadcast %22 : vector<24x1xf32> to vector<24x32xf32>
    %27 = arith.mulf %25, %26 : vector<24x32xf32>
    %28 = arith.truncf %27 : vector<24x32xf32> to vector<24x32xbf16>
    %c0_7 = arith.constant 0 : index
    %c0_8 = arith.constant 0 : index
    %c0_9 = arith.constant 0 : index
    %29 = vector.load %arg4[%c0_7, %c0_8, %c0_9] : memref<1x24x32xbf16, #tpu.memory_space<vmem>>, vector<1x24x32xbf16>
    %30 = vector.shape_cast %29 : vector<1x24x32xbf16> to vector<24x32xbf16>
    %31 = vector.shape_cast %28 : vector<24x32xbf16> to vector<1x24x32xbf16>
    tpu.vector_store %arg4[%c0_7, %c0_8, %c0_9], %31 {strides = array<i32>} : memref<1x24x32xbf16, #tpu.memory_space<vmem>>, vector<1x24x32xbf16>,
    return
  }
  func.func @transform_0(%arg0: i32, %arg1: i32) -> (i32, i32, i32) {
    %c0_i32 = arith.constant 0 : i32
    %c0_i32_0 = arith.constant 0 : i32
    %c0_i32_1 = arith.constant 0 : i32
    return %arg0, %c0_i32, %c0_i32_0 : i32, i32, i32
  }
  func.func @transform_1(%arg0: i32, %arg1: i32) -> (i32, i32, i32) {
    %c0_i32 = arith.constant 0 : i32
    %c0_i32_0 = arith.constant 0 : i32
    %c0_i32_1 = arith.constant 0 : i32
    return %arg0, %c0_i32, %c0_i32_0 : i32, i32, i32
  }
  func.func @transform_2(%arg0: i32, %arg1: i32) -> (i32, i32, i32) {
    %c0_i32 = arith.constant 0 : i32
    %c0_i32_0 = arith.constant 0 : i32
    return %arg0, %arg1, %c0_i32 : i32, i32, i32
  }
}

</mosaic_0001>

<llo_original>
// kernel: tpu_custom_call.1
$region0: #{tpu_custom_call.1}
  #allocation0 [shape = 'u32[]', space=smem, size = 0x4, offset = 0x4, fixed_abs, tag = 'smem constant byte address 0x4 - core index']
  #allocation1 [shape = 'u32[144,128]{1,0:T(1,128)}', space=vmem, size = 0x12000, scoped, tag = 'internal scratch']
  %s0 = inlined_call_operand.hbm [shape: f32[2,2,8], index: 0, kind: input, shape index: {}]
  %s1 = inlined_call_operand.hbm [shape: f32[2,8,32], index: 1, kind: input, shape index: {}]
  %s2 = inlined_call_operand.vmem [shape: bf16[2,23,32], index: 2, kind: output, shape index: {}]
  %s3 = sld [smem:[#allocation0]]
  $region49: #{tpu_custom_call.1} parent=0
    _
  %s5 = ssub.s32 1, %s3
  %s6 = scalar_select 0, %s5, %s3
  $region1: #{tpu_custom_call.1} parent=0
    #allocation2 [shape = 'u8[2048]{0}', space=vmem, size = 0x800, scoped, tag = 'input window, operand 0']
    #allocation3 [shape = 's32[2]{0}', space=sflag, size = 0x8, scoped, tag = 'scoped memory for tpu_custom_call.1']
    #allocation4 [shape = 'u8[8192]{0}', space=vmem, size = 0x2000, scoped, tag = 'input window, operand 1']
    #allocation5 [shape = 's32[2]{0}', space=sflag, size = 0x8, scoped, tag = 'scoped memory for tpu_custom_call.1']
    %7 = vsyncpa [#allocation3], 0
    %s8 = scalar_lea.sflag [#allocation3], 1
    %9 = vsyncpa %s8, 0
    %10 = vsyncpa [#allocation5], 0
    %s11 = scalar_lea.sflag [#allocation5], 1
    %12 = vsyncpa %s11, 0
    loop: start=0, step=1, limit=4
    $region2: #{tpu_custom_call.1} parent=1 // loop_pre_header
      _
    $region3: #{tpu_custom_call.1} parent=1 // loop_header
      %s14 = sphi 0, %s18
      %p15 = scmp.ge.s32.totalorder %s14, 4
      %s21 = sphi 0, %s33
      %s22 = sphi 0, %s29
      %s23 = sphi 0, %s21
      %s24 = sphi 0, %s22
      %s25 = sphi 0, %s23
      %s26 = sphi 0, %s24
      %s36 = sphi 0, %s38
      %s39 = sphi 0, %s36
      %s40 = sphi 0, %s39
      %s56 = sphi 0, %s40
      %s62 = sphi 0, %s64
      %s65 = sphi 0, %s62
      %s66 = sphi 0, %s65
      %s82 = sphi 0, %s66
      %s90 = sphi 0, %s92
      %s93 = sphi 0, %s90
      %s94 = sphi 0, %s93
      %s110 = sphi 0, %s94
    $region4: #{tpu_custom_call.1} parent=1 // loop_header_branch
      %17 = sbr.rel (%p15) target = $region8
    $region5: #{tpu_custom_call.1} parent=1 // loop_body
      %s19 = ssub.s32 %s14, 1
      %s20 = ssub.s32 %s14, 2
      %s27 = sadd.s32 1, %s22
      %p28 = scmp.ge.s32.totalorder %s27, 1
      %s29 = scalar_select %p28, 0, %s27
      %s30 = sadd.s32 1, %s21
      %s31 = scalar_select %p28, %s30, %s21
      %p32 = scmp.ge.s32.totalorder %s31, 2
      %s33 = scalar_select %p32, 0, %s31
      %s34 = ssub.s32 %s21, %s33
      %p35 = scmp.eq.s32.totalorder %s34, 0
      %s37 = sadd.s32 %s36, 1
      %s38 = scalar_select %p35, %s36, %s37
      %p41 = pneg %p35
      %p42 = scmp.eq.s32.totalorder %s14, 1
      %p43 = por %p41, %p42
      %p44 = scmp.ne.s32.totalorder %s36, %s39
      %p45 = scmp.eq.s32.totalorder %s14, 0
      %p46 = por %p44, %p45
      %p47 = scmp.ne.s32.totalorder %s36, %s39
      %p48 = scmp.eq.s32.totalorder %s19, 1
      %p49 = por %p47, %p48
      %p50 = scmp.ne.s32.totalorder %s39, %s40
      %p51 = scmp.eq.s32.totalorder %s19, 0
      %p52 = por %p50, %p51
      %p53 = scmp.ne.s32.totalorder %s39, %s40
      %p54 = scmp.eq.s32.totalorder %s20, 1
      %p55 = por %p53, %p54
      %p57 = scmp.ne.s32.totalorder %s40, %s56
      %p58 = scmp.eq.s32.totalorder %s20, 0
      %p59 = por %p57, %p58
      %s60 = ssub.s32 %s21, %s33
      %p61 = scmp.eq.s32.totalorder %s60, 0
      %s63 = sadd.s32 %s62, 1
      %s64 = scalar_select %p61, %s62, %s63
      %p67 = pneg %p61
      %p68 = scmp.eq.s32.totalorder %s14, 1
      %p69 = por %p67, %p68
      %p70 = scmp.ne.s32.totalorder %s62, %s65
      %p71 = scmp.eq.s32.totalorder %s14, 0
      %p72 = por %p70, %p71
      %p73 = scmp.ne.s32.totalorder %s62, %s65
      %p74 = scmp.eq.s32.totalorder %s19, 1
      %p75 = por %p73, %p74
      %p76 = scmp.ne.s32.totalorder %s65, %s66
      %p77 = scmp.eq.s32.totalorder %s19, 0
      %p78 = por %p76, %p77
      %p79 = scmp.ne.s32.totalorder %s65, %s66
      %p80 = scmp.eq.s32.totalorder %s20, 1
      %p81 = por %p79, %p80
      %p83 = scmp.ne.s32.totalorder %s66, %s82
      %p84 = scmp.eq.s32.totalorder %s20, 0
      %p85 = por %p83, %p84
      %s86 = ssub.s32 %s21, %s33
      %s87 = ssub.s32 %s22, %s29
      %s88 = sor.u32 %s86, %s87
      %p89 = scmp.eq.s32.totalorder %s88, 0
      %s91 = sadd.s32 %s90, 1
      %s92 = scalar_select %p89, %s90, %s91
      %p95 = pneg %p89
      %p96 = scmp.eq.s32.totalorder %s14, 1
      %p97 = por %p95, %p96
      %p98 = scmp.ne.s32.totalorder %s90, %s93
      %p99 = scmp.eq.s32.totalorder %s14, 0
      %p100 = por %p98, %p99
      %p101 = scmp.ne.s32.totalorder %s90, %s93
      %p102 = scmp.eq.s32.totalorder %s19, 1
      %p103 = por %p101, %p102
      %p104 = scmp.ne.s32.totalorder %s93, %s94
      %p105 = scmp.eq.s32.totalorder %s19, 0
      %p106 = por %p104, %p105
      %p107 = scmp.ne.s32.totalorder %s93, %s94
      %p108 = scmp.eq.s32.totalorder %s20, 1
      %p109 = por %p107, %p108
      %p111 = scmp.ne.s32.totalorder %s94, %s110
      %p112 = scmp.eq.s32.totalorder %s20, 0
      %p113 = por %p111, %p112
      %p114 = scmp.le.s32.totalorder 1, %s14
      %p115 = scmp.lt.s32.totalorder %s14, 3
      %p116 = pnand %p114, %p115
      %p117 = pneg %p116
      // Predicated region
      $region9: #{tpu_custom_call.1} parent=5 // pred_check
        _
      $region10: #{tpu_custom_call.1} parent=5 // pred_check_branch
        %119 = sbr.rel (%p116) target = $region12
      $region11: #{tpu_custom_call.1} parent=5 // pred_region
        %s120 = ssub.s32 %s14, 1
      $region12: #{tpu_custom_call.1} parent=5 // pred_fallthru
        _
      %p121 = scmp.lt.s32.totalorder %s14, 2
      // Predicated region
      $region13: #{tpu_custom_call.1} parent=5 // pred_check
        %p122 = pneg %p121
      $region14: #{tpu_custom_call.1} parent=5 // pred_check_branch
        %124 = sbr.rel (%p122) target = $region16
      $region15: #{tpu_custom_call.1} parent=5 // pred_region
        // Predicated region
        $region17: #{tpu_custom_call.1} parent=15 // pred_check
          %p125 = pneg %p46
        $region18: #{tpu_custom_call.1} parent=15 // pred_check_branch
          %127 = sbr.rel (%p125) target = $region20
        $region19: #{tpu_custom_call.1} parent=15 // pred_region
          %s128 = sand.u32 %s36, 1
          %s129 = scalar_lea.sflag [#allocation3], %s128
          %s130 = sand.u32 %s36, 1
          %s131 = smul.addr %s130, 2
          %s132 = scalar_lea.vmem [#allocation2], %s131
          %s134 = ssub.s32 32, 32
          %135 = vsyncadd %s129, %s134
          %s136 = smul.addr %s21, 32
          %s137 = scalar_lea.hbm %s0, %s136
          %s139 = sshll.u32 %s132, 4
          %s140 = int_to_ptr.vmem [resolvable:$true] %s139
          %142 = dma.hbm_to_vmem [thread:$0]  %s137, 32, %s140, %s129
        $region20: #{tpu_custom_call.1} parent=15 // pred_fallthru
          _
        // Predicated region
        $region21: #{tpu_custom_call.1} parent=15 // pred_check
          %p143 = pneg %p72
        $region22: #{tpu_custom_call.1} parent=15 // pred_check_branch
          %145 = sbr.rel (%p143) target = $region24
        $region23: #{tpu_custom_call.1} parent=15 // pred_region
          %s146 = sand.u32 %s62, 1
          %s147 = scalar_lea.sflag [#allocation5], %s146
          %s148 = sand.u32 %s62, 1
          %s149 = smul.addr %s148, 8
          %s150 = scalar_lea.vmem [#allocation4], %s149
          %s152 = ssub.s32 128, 128
          %153 = vsyncadd %s147, %s152
          %s154 = smul.addr %s21, 128
          %s155 = scalar_lea.hbm %s1, %s154
          %s157 = sshll.u32 %s150, 4
          %s158 = int_to_ptr.vmem [resolvable:$true] %s157
          %160 = dma.hbm_to_vmem [thread:$0]  %s155, 128, %s158, %s147
        $region24: #{tpu_custom_call.1} parent=15 // pred_fallthru
          _
      $region16: #{tpu_custom_call.1} parent=5 // pred_fallthru
        _
      %p161 = scmp.le.s32.totalorder 1, %s14
      %p162 = scmp.lt.s32.totalorder %s14, 3
      %p163 = pnand %p161, %p162
      %p164 = pneg %p163
      // Predicated region
      $region25: #{tpu_custom_call.1} parent=5 // pred_check
        _
      $region26: #{tpu_custom_call.1} parent=5 // pred_check_branch
        %166 = sbr.rel (%p163) target = $region28
      $region27: #{tpu_custom_call.1} parent=5 // pred_region
        %s167 = ssub.s32 %s14, 1
        %s168 = sand.u32 %s39, 1
        %s169 = scalar_lea.sflag [#allocation3], %s168
        %s170 = sand.u32 %s39, 1
        %s171 = smul.addr %s170, 2
        %s172 = scalar_lea.vmem [#allocation2], %s171
        // Predicated region
        $region29: #{tpu_custom_call.1} parent=27 // pred_check
          %p173 = pneg %p52
        $region30: #{tpu_custom_call.1} parent=27 // pred_check_branch
          %175 = sbr.rel (%p173) target = $region32
        $region31: #{tpu_custom_call.1} parent=27 // pred_region
          %176 = dma.done %s169, 32
        $region32: #{tpu_custom_call.1} parent=27 // pred_fallthru
          _
        %s177 = sand.u32 %s65, 1
        %s178 = scalar_lea.sflag [#allocation5], %s177
        %s179 = sand.u32 %s65, 1
        %s180 = smul.addr %s179, 8
        %s181 = scalar_lea.vmem [#allocation4], %s180
        // Predicated region
        $region33: #{tpu_custom_call.1} parent=27 // pred_check
          %p182 = pneg %p78
        $region34: #{tpu_custom_call.1} parent=27 // pred_check_branch
          %184 = sbr.rel (%p182) target = $region36
        $region35: #{tpu_custom_call.1} parent=27 // pred_region
          %185 = dma.done %s178, 128
        $region36: #{tpu_custom_call.1} parent=27 // pred_fallthru
          _
        %s186 = sand.u32 %s39, 1
        %s187 = scalar_lea.sflag [#allocation3], %s186
        %s188 = sand.u32 %s39, 1
        %s189 = smul.addr %s188, 2
        %s190 = scalar_lea.vmem [#allocation2], %s189
        %p191 = pneg %p52
        %p192 = pneg %p49
        %s193 = sand.u32 %s65, 1
        %s194 = scalar_lea.sflag [#allocation5], %s193
        %s195 = sand.u32 %s65, 1
        %s196 = smul.addr %s195, 8
        %s197 = scalar_lea.vmem [#allocation4], %s196
        %p198 = pneg %p78
        %p199 = pneg %p75
        %p200 = pneg %p106
        %p201 = pneg %p103
        %s202 = smul.u32 3, %s24
        %p203 = scmp.lt.s32.totalorder %s23, 1
        %s204 = scalar_select %p203, %s23, 1
        %p205 = scmp.lt.s32.totalorder %s202, 2
        %s206 = scalar_select %p205, %s202, 2
        %s207 = smul.addr %s204, 3
        %s208 = sadd.s32 %s206, %s207
        %s209 = smul.addr %s208, 4
        %s210 = scalar_lea.vmem %s2, %s209
        %s211 = smul.u32 3, %s24
        %p212 = scmp.lt.s32.totalorder %s23, 1
        %s213 = scalar_select %p212, %s23, 1
        %p214 = scmp.lt.s32.totalorder %s211, 2
        %s215 = scalar_select %p214, %s211, 2
        %s216 = smul.addr %s213, 3
        %s217 = sadd.s32 %s215, %s216
        %s218 = smul.addr %s217, 4
        %s219 = scalar_lea.vmem %s2, %s218
        %s220 = smul.u32 3, %s24
        %v222 = vld [vmem:[%s172] sm:$0x3]
        %v223 = vld [vmem:[%s181] sm:$0xff]
        %s224 = smul.u32 %s24, 24
        %s225 = scvt.s32.f32 %s224
        %v226 = vlaneseq
        %v227 = vshrl.u32 %v226, 7
        %v228 = vadd.s32 %v227, 8
        %v229 = vadd.s32 %v227, 16
        %v230 = vcvt.s32.f32 %v227
        %v231 = vcvt.s32.f32 %v228
        %v232 = vcvt.s32.f32 %v229
        %v233 = vstv %s225
        %v234 = vadd.f32 %v230, %v233
        %v235 = vadd.f32 %v231, %v233
        %v236 = vadd.f32 %v232, %v233
        %v237 = vlaneseq
        %v238 = vshrl.u32 %v237, 7
        %v239 = vsub.s32 0, %v238
        %v240 = vrot.slane %v222, %v239
        %v241 = vsub.f32 %v234, %v240
        %v242 = vsub.f32 %v235, %v240
        %v243 = vsub.f32 %v236, %v240
        %v244 = vlaneseq
        %v245 = vshrl.u32 %v244, 7
        %v246 = vsub.s32 1, %v245
        %v247 = vrot.slane %v222, %v246
        %v248 = vmul.f32 %v247, %v241
        %v249 = vmul.f32 %v247, %v242
        %v250 = vmul.f32 %v247, %v243
        %v251 = vmul.f32 %v248, %v241
        %v252 = vmul.f32 %v249, %v242
        %v253 = vmul.f32 %v250, %v243
        %v254 = vmul.f32 %v251, 1.442695
        %v255 = vpow.pop %v254
        %v256 = vmul.f32 %v252, 1.442695
        %v257 = vpow.pop %v256
        %v258 = vmul.f32 %v253, 1.442695
        %v259 = vpow.pop %v258
        %vm260 = vcmask 64512
        %v261 = vsel %vm260, %v255, 0.0
        %262 = vadd.xlane.f32.xlu0 %v261
        %v263 = vpop.xlane.xlu0 %262
        %v264 = vsel %vm260, %v257, 0.0
        %265 = vadd.xlane.f32.xlu0 %v264
        %v266 = vpop.xlane.xlu0 %265
        %v267 = vsel %vm260, %v259, 0.0
        %268 = vadd.xlane.f32.xlu0 %v267
        %v269 = vpop.xlane.xlu0 %268
        %v270 = vmax.f32 %v263, 1e-12
        %v271 = vmax.f32 %v266, 1e-12
        %v272 = vmax.f32 %v269, 1e-12
        %v273 = vrcp.pop %v270
        %v274 = vrcp.pop %v271
        %v275 = vrcp.pop %v272
        %v276 = vpack.c.bf16 %v257, %v255
        %v277 = vpack.c.bf16 %v259, %v259
        %v278 = vpack.c.bf16 %v223, %v223
        %v280 = vsel %vm260, %v276, 0
        %v283 = vsel %vm260, %v277, 0
        %vm285 = vcmask 1043456
        %v287 = vsel %vm285, %v278, 0
        %289 = vmatprep.subr.bf16.mxu0 0
        %290 = vmatpush1.bf16.msra.mxu0 %v287
        %291 = vmatprep.subr.bf16.mxu0 0
        %292 = vmatpush1.bf16.msra.mxu0 0
        %293 = vmatprep.subr.bf16.mxu0 0
        %294 = vmatpush1.bf16.msra.mxu0 0
        %295 = vmatprep.subr.bf16.mxu0 0
        %296 = vmatpush1.bf16.msra.mxu0 0
        %297 = vmatprep.subr.bf16.mxu0 0
        %298 = vmatpush1.bf16.msra.mxu0 0
        %299 = vmatprep.subr.bf16.mxu0 0
        %300 = vmatpush1.bf16.msra.mxu0 0
        %301 = vmatprep.subr.bf16.mxu0 0
        %302 = vmatpush1.bf16.msra.mxu0 0
        %303 = vmatprep.subr.bf16.mxu0 0
        %304 = vmatpush1.bf16.msra.mxu0 0
        %305 = vmatprep.subr.bf16.mxu0 0
        %306 = vmatpush1.bf16.msra.mxu0 0
        %307 = vmatprep.subr.bf16.mxu0 0
        %308 = vmatpush1.bf16.msra.mxu0 0
        %309 = vmatprep.subr.bf16.mxu0 0
        %310 = vmatpush1.bf16.msra.mxu0 0
        %311 = vmatprep.subr.bf16.mxu0 0
        %312 = vmatpush1.bf16.msra.mxu0 0
        %313 = vmatprep.subr.bf16.mxu0 0
        %314 = vmatpush1.bf16.msra.mxu0 0
        %315 = vmatprep.subr.bf16.mxu0 0
        %316 = vmatpush1.bf16.msra.mxu0 0
        %317 = vmatprep.subr.bf16.mxu0 0
        %318 = vmatpush1.bf16.msra.mxu0 0
        %319 = vmatprep.subr.bf16.mxu0 0
        %320 = vmatpush1.bf16.msra.mxu0 0
        %321 = vmatprep.mubr.bf16.mxu0 0
        %322 = vmatmul.mubr.bf16.gmra.mrb[0].mxu0 %v280
        %v323 = vpop.f32.mrb[0].mxu0
        %v324 = vadd.f32 0.0, %v323
        %v325 = vpop.f32.mrb[0].mxu0
        %v326 = vpop.f32.mrb[0].mxu0
        %v327 = vadd.f32 0.0, %v326
        %v328 = vpop.f32.mrb[0].mxu0
        %329 = vmatprep.mubr.bf16.mxu0 0
        %330 = vmatmul.mubr.bf16.gmra.mrb[0].mxu0 %v283
        %v331 = vpop.f32.mrb[0].mxu0
        %v332 = vadd.f32 0.0, %v331
        %v333 = vpop.f32.mrb[0].mxu0
        %v334 = vpop.f32.mrb[0].mxu0
        %v335 = vpop.f32.mrb[0].mxu0
        %336 = vdwg.mxu0
        %v337 = vmul.f32 %v324, %v273
        %v338 = vmul.f32 %v327, %v274
        %v339 = vmul.f32 %v332, %v275
        %v340 = vpack.c.bf16 %v338, %v337
        %v341 = vpack.c.bf16 %v339, %v339
        %v344 = vunpack.c.l.b16 %v340
        %v345 = vunpack.c.h.b16 %v340
        %v346 = vunpack.c.l.b16 %v341
        %v347 = vpack.c.b16 %v344, %v344
        %v348 = vpack.c.b16 %v345, %v345
        %v349 = vpack.c.b16 %v346, %v346
        %vm353 = vcmask 257024
        %354 = vst.msk [vmem:[%s219] sm:$0xf] %vm353, %v347
        %355 = vst.msk [vmem:[%s219 + $0x4] sm:$0xf] %vm353, %v348
        %356 = vst.msk [vmem:[%s219 + $0x8] sm:$0xf] %vm353, %v349
        %s357 = smul.u32 3, %s24
        %p358 = scmp.lt.s32.totalorder %s23, 1
        %s359 = scalar_select %p358, %s23, 1
        %p360 = scmp.lt.s32.totalorder %s357, 2
        %s361 = scalar_select %p360, %s357, 2
        %s362 = smul.addr %s359, 3
        %s363 = sadd.s32 %s361, %s362
        %s364 = smul.addr %s363, 4
        %s365 = scalar_lea.vmem %s2, %s364
        // Predicated region
        $region37: #{tpu_custom_call.1} parent=27 // pred_check
          %p366 = pneg %p103
        $region38: #{tpu_custom_call.1} parent=27 // pred_check_branch
          %368 = sbr.rel (%p366) target = $region40
        $region39: #{tpu_custom_call.1} parent=27 // pred_region
          %s369 = smul.u32 3, %s24
        $region40: #{tpu_custom_call.1} parent=27 // pred_fallthru
          _
      $region28: #{tpu_custom_call.1} parent=5 // pred_fallthru
        _
      %p370 = scmp.le.s32.totalorder 2, %s14
      // Predicated region
      $region41: #{tpu_custom_call.1} parent=5 // pred_check
        %p371 = pneg %p370
      $region42: #{tpu_custom_call.1} parent=5 // pred_check_branch
        %373 = sbr.rel (%p371) target = $region44
      $region43: #{tpu_custom_call.1} parent=5 // pred_region
        %s374 = ssub.s32 %s14, 2
        // Predicated region
        $region45: #{tpu_custom_call.1} parent=43 // pred_check
          %p375 = pneg %p109
        $region46: #{tpu_custom_call.1} parent=43 // pred_check_branch
          %377 = sbr.rel (%p375) target = $region48
        $region47: #{tpu_custom_call.1} parent=43 // pred_region
          %s378 = smul.u32 3, %s26
          %p379 = scmp.lt.s32.totalorder %s25, 1
          %s380 = scalar_select %p379, %s25, 1
          %p381 = scmp.lt.s32.totalorder %s378, 2
          %s382 = scalar_select %p381, %s378, 2
          %s383 = smul.addr %s380, 3
          %s384 = sadd.s32 %s382, %s383
          %s385 = smul.addr %s384, 4
          %s386 = scalar_lea.vmem %s2, %s385
        $region48: #{tpu_custom_call.1} parent=43 // pred_fallthru
          _
      $region44: #{tpu_custom_call.1} parent=5 // pred_fallthru
        _
    $region6: #{tpu_custom_call.1} parent=1 // loop_footer
      %s18 = sadd.s32 1, %s14
    $region7: #{tpu_custom_call.1} parent=1 // loop_footer_branch
      %13 = sbr.rel target = $region3
    $region8: #{tpu_custom_call.1} parent=1 // loop_exit
      _
    %387 = vsyncpa [#allocation3], 1
    %s388 = scalar_lea.sflag [#allocation3], 1
    %389 = vsyncpa %s388, 1
    %390 = vsyncpa [#allocation5], 1
    %s391 = scalar_lea.sflag [#allocation5], 1
    %392 = vsyncpa %s391, 1

</llo_original>
